<compile_context>
chip_gen: v5e
topology: v5e:2x2
jax: 0.10.0
libtpu: 0.0.40
codegen_flags: <defaults>
</compile_context>

<pallas_src>
import jax
import jax.numpy as jnp
from jax.experimental import pallas as pl
from jax.experimental.pallas import tpu as pltpu


def _ffn_kernel(x_ref, w1_ref, b1_ref, w2_ref, b2_ref, o_ref):
    # x_ref:  (Cin, tile_l)  f32     w1_ref: (Cout, Cin)  bf16   b1_ref: (Cout, 1) f32
    # w2_ref: (Cout, Cout)   bf16    b2_ref: (Cout, 1)    f32    o_ref:  (Cout, tile_l) f32
    xb = x_ref[...].astype(jnp.bfloat16)
    # W1 @ x : contraction over Cin, weights consumed in stored (out, in) layout.
    h = jnp.dot(w1_ref[...], xb, preferred_element_type=jnp.float32) + b1_ref[...]
    h = jnp.maximum(h, 0.0)                      # ReLU (f32)
    # Dropout (eval/inference mode) == identity
    y = jnp.dot(w2_ref[...], h.astype(jnp.bfloat16),
                preferred_element_type=jnp.float32) + b2_ref[...]
    o_ref[...] = y.astype(o_ref.dtype)


def fc_feed_forward(x_ncl, w1, b1, w2, b2, *, tile_l=None):
    """x_ncl: (N, Cin, L) float32.  w1: (Cout, Cin), w2: (Cout, Cout).  Returns (N, Cout, L)."""
    N, Cin, L = x_ncl.shape
    Cout = w1.shape[0]

    # ---- generation-aware VMEM budget & default lane tile --------------------------
    try:
        vmem_phys = int(pltpu.get_tpu_info().vmem_capacity_bytes)
    except Exception:
        vmem_phys = 64 * 2**20
    if vmem_phys <= 64 * 2**20:           # v7x-class: 64 MiB physical per TensorCore
        vmem_budget = 48 * 2**20
        default_tile = 512
    else:                                  # v5e / v6e: 128 MiB physical
        vmem_budget = 100 * 2**20
        default_tile = 2048

    if tile_l is None:
        tile_l = default_tile
    # Keep tile_l a multiple of 128 (lane-dense stores for interior blocks), no bigger
    # than the 128-rounded sequence length.
    tile_l = max(128, min((int(tile_l) // 128) * 128, pl.cdiv(L, 128) * 128))

    def _vmem_need(t):
        io = 2 * t * (Cin + Cout) * 4                 # double-buffered f32 x / out tiles
        interm = t * (Cout * 4 + (Cin + Cout) * 2)    # f32 h + bf16 copies of x and h
        wgt = 2 * (Cout * Cin + Cout * Cout) + 2 * Cout * 4  # single-buffered bf16 W + f32 b
        return io + interm + wgt

    while tile_l > 128 and _vmem_need(tile_l) > vmem_budget:
        tile_l -= 128

    # v7x megacore: make sure there are enough parallel grid steps to feed 2 TCs.
    while tile_l > 128 and N * pl.cdiv(L, tile_l) < 8:
        tile_l = max(128, ((tile_l // 2) // 128) * 128)

    vmem_limit = int(min(vmem_budget, max(32 * 2**20, 2 * _vmem_need(tile_l))))

    # ---- one-time weight prep (cheap relative to the streamed activations) ---------
    w1_b = w1.astype(jnp.bfloat16)
    w2_b = w2.astype(jnp.bfloat16)
    b1_col = b1.reshape(Cout, 1).astype(jnp.float32)
    b2_col = b2.reshape(Cout, 1).astype(jnp.float32)

    grid = (N, pl.cdiv(L, tile_l))

    flops = 2 * N * L * Cout * (Cin + Cout)
    bytes_accessed = (4 * N * L * (Cin + Cout)            # f32 x in, f32 y out
                      + 2 * (Cout * Cin + Cout * Cout)    # bf16 weights
                      + 8 * Cout)                         # f32 biases
    cost = pl.CostEstimate(flops=flops, transcendentals=0, bytes_accessed=bytes_accessed)

    resident = pl.Buffered(1)  # constant index_map -> fetched once, no double buffer

    out = pl.pallas_call(
        _ffn_kernel,
        out_shape=jax.ShapeDtypeStruct((N, Cout, L), x_ncl.dtype),
        grid_spec=pltpu.PrefetchScalarGridSpec(
            num_scalar_prefetch=0,
            grid=grid,
            in_specs=[
                # x tile: batch dim squeezed away, kernel sees (Cin, tile_l).
                pl.BlockSpec((pl.Squeezed(), Cin, tile_l), lambda n, l: (n, 0, l)),
                # Weights/biases: constant index_map + single buffer -> VMEM-resident.
                pl.BlockSpec((Cout, Cin), lambda n, l: (0, 0), pipeline_mode=resident),   # W1
                pl.BlockSpec((Cout, 1), lambda n, l: (0, 0), pipeline_mode=resident),     # b1
                pl.BlockSpec((Cout, Cout), lambda n, l: (0, 0), pipeline_mode=resident),  # W2
                pl.BlockSpec((Cout, 1), lambda n, l: (0, 0), pipeline_mode=resident),     # b2
            ],
            out_specs=pl.BlockSpec(
                (pl.Squeezed(), Cout, tile_l), lambda n, l: (n, 0, l)
            ),
        ),
        compiler_params=pltpu.CompilerParams(
            dimension_semantics=("parallel", "parallel"),
            vmem_limit_bytes=vmem_limit,
        ),
        cost_estimate=cost,
    )(x_ncl, w1_b, b1_col, w2_b, b2_col)

    return out


def _reference(x_ncl, w1, b1, w2, b2):
    # Pure-JAX f32 reference of Conv1d(k=1) -> ReLU -> Conv1d(k=1)
    h = jnp.einsum("ncl,oc->nol", x_ncl, w1) + b1[None, :, None]
    h = jnp.maximum(h, 0.0)
    return jnp.einsum("ncl,oc->nol", h, w2) + b2[None, :, None]


if __name__ == "__main__":
    # Shapes implied by the module: x is (batch, in_channels, length).
    # L=16 is NOT a multiple of tile_l, so this also exercises the masked edge block.
    N, Cin, Cout, L = 2, 4, 8, 16

    key = jax.random.PRNGKey(0)
    kx, k1, kb1, k2, kb2 = jax.random.split(key, 5)

    x = jax.random.normal(kx, (N, Cin, L), dtype=jnp.float32)

    # Deterministic parameter init (Conv1d weight shape (out, in, 1) -> squeeze k)
    bound1 = 1.0 / (Cin ** 0.5)
    w1 = jax.random.uniform(k1, (Cout, Cin), minval=-bound1, maxval=bound1, dtype=jnp.float32)
    b1 = jax.random.uniform(kb1, (Cout,), minval=-bound1, maxval=bound1, dtype=jnp.float32)
    bound2 = 1.0 / (Cout ** 0.5)
    w2 = jax.random.uniform(k2, (Cout, Cout), minval=-bound2, maxval=bound2, dtype=jnp.float32)
    b2 = jax.random.uniform(kb2, (Cout,), minval=-bound2, maxval=bound2, dtype=jnp.float32)

    y = fc_feed_forward(x, w1, b1, w2, b2)
    y = jax.block_until_ready(y)

    y_ref = _reference(x, w1, b1, w2, b2)
    assert y.shape == (N, Cout, L), y.shape
    # Tolerance relaxed vs. the f32 reference because the matmuls run with bf16
    # operands (f32 accumulation).
    assert jnp.allclose(y, y_ref, atol=3e-2, rtol=3e-2), "mismatch vs reference"

    print("KERNEL_OK")
</pallas_src>

<mosaic_0001>
module attributes {stable_mosaic.version = 11 : i64} {
  func.func @_ffn_kernel(%arg0: i32, %arg1: i32, %arg2: memref<1x4x128xf32, #tpu.memory_space<vmem>>, %arg3: memref<8x4xbf16, #tpu.memory_space<vmem>>, %arg4: memref<8x1xf32, #tpu.memory_space<vmem>>, %arg5: memref<8x8xbf16, #tpu.memory_space<vmem>>, %arg6: memref<8x1xf32, #tpu.memory_space<vmem>>, %arg7: memref<1x8x128xf32, #tpu.memory_space<vmem>>) attributes {dimension_semantics = [#tpu.dimension_semantics<parallel>, #tpu.dimension_semantics<parallel>], iteration_bounds = array<i64: 2, 1>, scalar_prefetch = 0 : i64, scratch_operands = 0 : i64, tpu.core_type = #tpu.core_type<tc>, window_params = [{transform_indices = @transform_0, window_bounds = array<i64: 1, 4, 128>}, {pipeline_mode = #tpu.pipeline_mode<synchronous>, transform_indices = @transform_1, window_bounds = array<i64: 8, 4>}, {pipeline_mode = #tpu.pipeline_mode<synchronous>, transform_indices = @transform_2, window_bounds = array<i64: 8, 1>}, {pipeline_mode = #tpu.pipeline_mode<synchronous>, transform_indices = @transform_3, window_bounds = array<i64: 8, 8>}, {pipeline_mode = #tpu.pipeline_mode<synchronous>, transform_indices = @transform_4, window_bounds = array<i64: 8, 1>}, {transform_indices = @transform_5, window_bounds = array<i64: 1, 8, 128>}]} {
    %c0 = arith.constant 0 : index
    %c0_0 = arith.constant 0 : index
    %c0_1 = arith.constant 0 : index
    %0 = vector.load %arg2[%c0, %c0_0, %c0_1] : memref<1x4x128xf32, #tpu.memory_space<vmem>>, vector<1x4x128xf32>
    %1 = vector.shape_cast %0 : vector<1x4x128xf32> to vector<4x128xf32>
    %2 = arith.truncf %1 : vector<4x128xf32> to vector<4x128xbf16>
    %c0_2 = arith.constant 0 : index
    %c0_3 = arith.constant 0 : index
    %3 = vector.load %arg3[%c0_2, %c0_3] : memref<8x4xbf16, #tpu.memory_space<vmem>>, vector<8x4xbf16>
    %cst = arith.constant dense<0.000000e+00> : vector<8x128xf32>
    %4 = tpu.matmul %3, %2, %cst {dimension_numbers = #tpu.dot_dimension_numbers<[1], [0], [0], [1], [0, 0, 1, 1], [], []>} : vector<8x4xbf16>, vector<4x128xbf16>, vector<8x128xf32> -> vector<8x128xf32>
    %c0_4 = arith.constant 0 : index
    %c0_5 = arith.constant 0 : index
    %5 = vector.load %arg4[%c0_4, %c0_5] : memref<8x1xf32, #tpu.memory_space<vmem>>, vector<8x1xf32>
    %6 = vector.broadcast %5 : vector<8x1xf32> to vector<8x128xf32>
    %7 = arith.addf %4, %6 : vector<8x128xf32>
    %cst_6 = arith.constant 0.000000e+00 : f32
    %8 = vector.broadcast %cst_6 : f32 to vector<8x128xf32>
    %9 = arith.maximumf %7, %8 : vector<8x128xf32>
    %c0_7 = arith.constant 0 : index
    %c0_8 = arith.constant 0 : index
    %10 = vector.load %arg5[%c0_7, %c0_8] : memref<8x8xbf16, #tpu.memory_space<vmem>>, vector<8x8xbf16>
    %11 = arith.truncf %9 : vector<8x128xf32> to vector<8x128xbf16>
    %cst_9 = arith.constant dense<0.000000e+00> : vector<8x128xf32>
    %12 = tpu.matmul %10, %11, %cst_9 {dimension_numbers = #tpu.dot_dimension_numbers<[1], [0], [0], [1], [0, 0, 1, 1], [], []>} : vector<8x8xbf16>, vector<8x128xbf16>, vector<8x128xf32> -> vector<8x128xf32>
    %c0_10 = arith.constant 0 : index
    %c0_11 = arith.constant 0 : index
    %13 = vector.load %arg6[%c0_10, %c0_11] : memref<8x1xf32, #tpu.memory_space<vmem>>, vector<8x1xf32>
    %14 = vector.broadcast %13 : vector<8x1xf32> to vector<8x128xf32>
    %15 = arith.addf %12, %14 : vector<8x128xf32>
    %c0_12 = arith.constant 0 : index
    %c0_13 = arith.constant 0 : index
    %c0_14 = arith.constant 0 : index
    %16 = vector.load %arg7[%c0_12, %c0_13, %c0_14] : memref<1x8x128xf32, #tpu.memory_space<vmem>>, vector<1x8x128xf32>
    %17 = vector.shape_cast %16 : vector<1x8x128xf32> to vector<8x128xf32>
    %18 = vector.shape_cast %15 : vector<8x128xf32> to vector<1x8x128xf32>
    tpu.vector_store %arg7[%c0_12, %c0_13, %c0_14], %18 {strides = array<i32>} : memref<1x8x128xf32, #tpu.memory_space<vmem>>, vector<1x8x128xf32>,
    return
  }
  func.func @transform_0(%arg0: i32, %arg1: i32) -> (i32, i32, i32) {
    %c0_i32 = arith.constant 0 : i32
    %c0_i32_0 = arith.constant 0 : i32
    return %arg0, %c0_i32, %arg1 : i32, i32, i32
  }
  func.func @transform_1(%arg0: i32, %arg1: i32) -> (i32, i32) {
    %c0_i32 = arith.constant 0 : i32
    %c0_i32_0 = arith.constant 0 : i32
    %c0_i32_1 = arith.constant 0 : i32
    return %c0_i32, %c0_i32_0 : i32, i32
  }
  func.func @transform_2(%arg0: i32, %arg1: i32) -> (i32, i32) {
    %c0_i32 = arith.constant 0 : i32
    %c0_i32_0 = arith.constant 0 : i32
    %c0_i32_1 = arith.constant 0 : i32
    return %c0_i32, %c0_i32_0 : i32, i32
  }
  func.func @transform_3(%arg0: i32, %arg1: i32) -> (i32, i32) {
    %c0_i32 = arith.constant 0 : i32
    %c0_i32_0 = arith.constant 0 : i32
    %c0_i32_1 = arith.constant 0 : i32
    return %c0_i32, %c0_i32_0 : i32, i32
  }
  func.func @transform_4(%arg0: i32, %arg1: i32) -> (i32, i32) {
    %c0_i32 = arith.constant 0 : i32
    %c0_i32_0 = arith.constant 0 : i32
    %c0_i32_1 = arith.constant 0 : i32
    return %c0_i32, %c0_i32_0 : i32, i32
  }
  func.func @transform_5(%arg0: i32, %arg1: i32) -> (i32, i32, i32) {
    %c0_i32 = arith.constant 0 : i32
    %c0_i32_0 = arith.constant 0 : i32
    return %arg0, %c0_i32, %arg1 : i32, i32, i32
  }
}

</mosaic_0001>

<llo_original>
// kernel: tpu_custom_call.1
$region0: #{tpu_custom_call.1}
  #allocation0 [shape = 'u32[]', space=smem, size = 0x4, offset = 0x4, fixed_abs, tag = 'smem constant byte address 0x4 - core index']
  #allocation1 [shape = 'u32[72,128]{1,0:T(1,128)}', space=vmem, size = 0x9000, scoped, tag = 'internal scratch']
  %s0 = inlined_call_operand.vmem [shape: f32[2,4,16], index: 0, kind: input, shape index: {}]
  %s1 = inlined_call_operand.vmem [shape: bf16[8,4], index: 1, kind: input, shape index: {}]
  %s2 = inlined_call_operand.vmem [shape: f32[8,1], index: 2, kind: input, shape index: {}]
  %s3 = inlined_call_operand.vmem [shape: bf16[8,8], index: 3, kind: input, shape index: {}]
  %s4 = inlined_call_operand.vmem [shape: f32[8,1], index: 4, kind: input, shape index: {}]
  %s5 = inlined_call_operand.hbm [shape: f32[2,8,16], index: 5, kind: output, shape index: {}]
  %s6 = sld [smem:[#allocation0]]
  $region53: #{tpu_custom_call.1} parent=0
    _
  %s8 = ssub.s32 1, %s6
  %s9 = scalar_select 0, %s8, %s6
  $region1: #{tpu_custom_call.1} parent=0
    #allocation2 [shape = 'u8[8192]{0}', space=vmem, size = 0x2000, scoped, tag = 'output window, operand 0']
    #allocation3 [shape = 's32[2]{0}', space=sflag, size = 0x8, scoped, tag = 'scoped memory for tpu_custom_call.1']
    %10 = vsyncpa [#allocation3], 0
    %s11 = scalar_lea.sflag [#allocation3], 1
    %12 = vsyncpa %s11, 0
    loop: start=0, step=1, limit=4
    $region2: #{tpu_custom_call.1} parent=1 // loop_pre_header
      _
    $region3: #{tpu_custom_call.1} parent=1 // loop_header
      %s14 = sphi 0, %s18
      %p15 = scmp.ge.s32.totalorder %s14, 4
      %s21 = sphi 0, %s33
      %s22 = sphi 0, %s29
      %s23 = sphi 0, %s21
      %s24 = sphi 0, %s22
      %s25 = sphi 0, %s23
      %s26 = sphi 0, %s24
      %s38 = sphi 0, %s40
      %s41 = sphi 0, %s38
      %s42 = sphi 0, %s41
      %s58 = sphi 0, %s42
      %s62 = sphi 0, %s62
      %s64 = sphi 0, %s62
      %s65 = sphi 0, %s64
      %s79 = sphi 0, %s65
      %s83 = sphi 0, %s83
      %s85 = sphi 0, %s83
      %s86 = sphi 0, %s85
      %s100 = sphi 0, %s86
      %s104 = sphi 0, %s104
      %s106 = sphi 0, %s104
      %s107 = sphi 0, %s106
      %s121 = sphi 0, %s107
      %s125 = sphi 0, %s125
      %s127 = sphi 0, %s125
      %s128 = sphi 0, %s127
      %s142 = sphi 0, %s128
      %s150 = sphi 0, %s152
      %s153 = sphi 0, %s150
      %s154 = sphi 0, %s153
      %s170 = sphi 0, %s154
    $region4: #{tpu_custom_call.1} parent=1 // loop_header_branch
      %17 = sbr.rel (%p15) target = $region8
    $region5: #{tpu_custom_call.1} parent=1 // loop_body
      %s19 = ssub.s32 %s14, 1
      %s20 = ssub.s32 %s14, 2
      %s27 = sadd.s32 1, %s22
      %p28 = scmp.ge.s32.totalorder %s27, 1
      %s29 = scalar_select %p28, 0, %s27
      %s30 = sadd.s32 1, %s21
      %s31 = scalar_select %p28, %s30, %s21
      %p32 = scmp.ge.s32.totalorder %s31, 2
      %s33 = scalar_select %p32, 0, %s31
      %s34 = ssub.s32 %s21, %s33
      %s35 = ssub.s32 %s22, %s29
      %s36 = sor.u32 %s34, %s35
      %p37 = scmp.eq.s32.totalorder %s36, 0
      %s39 = sadd.s32 %s38, 1
      %s40 = scalar_select %p37, %s38, %s39
      %p43 = pneg %p37
      %p44 = scmp.eq.s32.totalorder %s14, 1
      %p45 = por %p43, %p44
      %p46 = scmp.ne.s32.totalorder %s38, %s41
      %p47 = scmp.eq.s32.totalorder %s14, 0
      %p48 = por %p46, %p47
      %p49 = scmp.ne.s32.totalorder %s38, %s41
      %p50 = scmp.eq.s32.totalorder %s19, 1
      %p51 = por %p49, %p50
      %p52 = scmp.ne.s32.totalorder %s41, %s42
      %p53 = scmp.eq.s32.totalorder %s19, 0
      %p54 = por %p52, %p53
      %p55 = scmp.ne.s32.totalorder %s41, %s42
      %p56 = scmp.eq.s32.totalorder %s20, 1
      %p57 = por %p55, %p56
      %p59 = scmp.ne.s32.totalorder %s42, %s58
      %p60 = scmp.eq.s32.totalorder %s20, 0
      %p61 = por %p59, %p60
      %s63 = sadd.s32 %s62, 1
      %p66 = scmp.eq.s32.totalorder %s14, 1
      %p67 = scmp.ne.s32.totalorder %s62, %s64
      %p68 = scmp.eq.s32.totalorder %s14, 0
      %p69 = por %p67, %p68
      %p70 = scmp.ne.s32.totalorder %s62, %s64
      %p71 = scmp.eq.s32.totalorder %s19, 1
      %p72 = por %p70, %p71
      %p73 = scmp.ne.s32.totalorder %s64, %s65
      %p74 = scmp.eq.s32.totalorder %s19, 0
      %p75 = por %p73, %p74
      %p76 = scmp.ne.s32.totalorder %s64, %s65
      %p77 = scmp.eq.s32.totalorder %s20, 1
      %p78 = por %p76, %p77
      %p80 = scmp.ne.s32.totalorder %s65, %s79
      %p81 = scmp.eq.s32.totalorder %s20, 0
      %p82 = por %p80, %p81
      %s84 = sadd.s32 %s83, 1
      %p87 = scmp.eq.s32.totalorder %s14, 1
      %p88 = scmp.ne.s32.totalorder %s83, %s85
      %p89 = scmp.eq.s32.totalorder %s14, 0
      %p90 = por %p88, %p89
      %p91 = scmp.ne.s32.totalorder %s83, %s85
      %p92 = scmp.eq.s32.totalorder %s19, 1
      %p93 = por %p91, %p92
      %p94 = scmp.ne.s32.totalorder %s85, %s86
      %p95 = scmp.eq.s32.totalorder %s19, 0
      %p96 = por %p94, %p95
      %p97 = scmp.ne.s32.totalorder %s85, %s86
      %p98 = scmp.eq.s32.totalorder %s20, 1
      %p99 = por %p97, %p98
      %p101 = scmp.ne.s32.totalorder %s86, %s100
      %p102 = scmp.eq.s32.totalorder %s20, 0
      %p103 = por %p101, %p102
      %s105 = sadd.s32 %s104, 1
      %p108 = scmp.eq.s32.totalorder %s14, 1
      %p109 = scmp.ne.s32.totalorder %s104, %s106
      %p110 = scmp.eq.s32.totalorder %s14, 0
      %p111 = por %p109, %p110
      %p112 = scmp.ne.s32.totalorder %s104, %s106
      %p113 = scmp.eq.s32.totalorder %s19, 1
      %p114 = por %p112, %p113
      %p115 = scmp.ne.s32.totalorder %s106, %s107
      %p116 = scmp.eq.s32.totalorder %s19, 0
      %p117 = por %p115, %p116
      %p118 = scmp.ne.s32.totalorder %s106, %s107
      %p119 = scmp.eq.s32.totalorder %s20, 1
      %p120 = por %p118, %p119
      %p122 = scmp.ne.s32.totalorder %s107, %s121
      %p123 = scmp.eq.s32.totalorder %s20, 0
      %p124 = por %p122, %p123
      %s126 = sadd.s32 %s125, 1
      %p129 = scmp.eq.s32.totalorder %s14, 1
      %p130 = scmp.ne.s32.totalorder %s125, %s127
      %p131 = scmp.eq.s32.totalorder %s14, 0
      %p132 = por %p130, %p131
      %p133 = scmp.ne.s32.totalorder %s125, %s127
      %p134 = scmp.eq.s32.totalorder %s19, 1
      %p135 = por %p133, %p134
      %p136 = scmp.ne.s32.totalorder %s127, %s128
      %p137 = scmp.eq.s32.totalorder %s19, 0
      %p138 = por %p136, %p137
      %p139 = scmp.ne.s32.totalorder %s127, %s128
      %p140 = scmp.eq.s32.totalorder %s20, 1
      %p141 = por %p139, %p140
      %p143 = scmp.ne.s32.totalorder %s128, %s142
      %p144 = scmp.eq.s32.totalorder %s20, 0
      %p145 = por %p143, %p144
      %s146 = ssub.s32 %s21, %s33
      %s147 = ssub.s32 %s22, %s29
      %s148 = sor.u32 %s146, %s147
      %p149 = scmp.eq.s32.totalorder %s148, 0
      %s151 = sadd.s32 %s150, 1
      %s152 = scalar_select %p149, %s150, %s151
      %p155 = pneg %p149
      %p156 = scmp.eq.s32.totalorder %s14, 1
      %p157 = por %p155, %p156
      %p158 = scmp.ne.s32.totalorder %s150, %s153
      %p159 = scmp.eq.s32.totalorder %s14, 0
      %p160 = por %p158, %p159
      %p161 = scmp.ne.s32.totalorder %s150, %s153
      %p162 = scmp.eq.s32.totalorder %s19, 1
      %p163 = por %p161, %p162
      %p164 = scmp.ne.s32.totalorder %s153, %s154
      %p165 = scmp.eq.s32.totalorder %s19, 0
      %p166 = por %p164, %p165
      %p167 = scmp.ne.s32.totalorder %s153, %s154
      %p168 = scmp.eq.s32.totalorder %s20, 1
      %p169 = por %p167, %p168
      %p171 = scmp.ne.s32.totalorder %s154, %s170
      %p172 = scmp.eq.s32.totalorder %s20, 0
      %p173 = por %p171, %p172
      %p174 = scmp.le.s32.totalorder 1, %s14
      %p175 = scmp.lt.s32.totalorder %s14, 3
      %p176 = pnand %p174, %p175
      %p177 = pneg %p176
      // Predicated region
      $region9: #{tpu_custom_call.1} parent=5 // pred_check
        _
      $region10: #{tpu_custom_call.1} parent=5 // pred_check_branch
        %179 = sbr.rel (%p176) target = $region12
      $region11: #{tpu_custom_call.1} parent=5 // pred_region
        %s180 = ssub.s32 %s14, 1
        // Predicated region
        $region13: #{tpu_custom_call.1} parent=11 // pred_check
          %p181 = pneg %p75
        $region14: #{tpu_custom_call.1} parent=11 // pred_check_branch
          %183 = sbr.rel (%p181) target = $region16
        $region15: #{tpu_custom_call.1} parent=11 // pred_region
          _
        $region16: #{tpu_custom_call.1} parent=11 // pred_fallthru
          _
        // Predicated region
        $region17: #{tpu_custom_call.1} parent=11 // pred_check
          %p184 = pneg %p96
        $region18: #{tpu_custom_call.1} parent=11 // pred_check_branch
          %186 = sbr.rel (%p184) target = $region20
        $region19: #{tpu_custom_call.1} parent=11 // pred_region
          _
        $region20: #{tpu_custom_call.1} parent=11 // pred_fallthru
          _
        // Predicated region
        $region21: #{tpu_custom_call.1} parent=11 // pred_check
          %p187 = pneg %p117
        $region22: #{tpu_custom_call.1} parent=11 // pred_check_branch
          %189 = sbr.rel (%p187) target = $region24
        $region23: #{tpu_custom_call.1} parent=11 // pred_region
          _
        $region24: #{tpu_custom_call.1} parent=11 // pred_fallthru
          _
        // Predicated region
        $region25: #{tpu_custom_call.1} parent=11 // pred_check
          %p190 = pneg %p138
        $region26: #{tpu_custom_call.1} parent=11 // pred_check_branch
          %192 = sbr.rel (%p190) target = $region28
        $region27: #{tpu_custom_call.1} parent=11 // pred_region
          _
        $region28: #{tpu_custom_call.1} parent=11 // pred_fallthru
          _
      $region12: #{tpu_custom_call.1} parent=5 // pred_fallthru
        _
      %p193 = scmp.lt.s32.totalorder %s14, 2
      // Predicated region
      $region29: #{tpu_custom_call.1} parent=5 // pred_check
        %p194 = pneg %p193
      $region30: #{tpu_custom_call.1} parent=5 // pred_check_branch
        %196 = sbr.rel (%p194) target = $region32
      $region31: #{tpu_custom_call.1} parent=5 // pred_region
        // Predicated region
        $region33: #{tpu_custom_call.1} parent=31 // pred_check
          %p197 = pneg %p48
        $region34: #{tpu_custom_call.1} parent=31 // pred_check_branch
          %199 = sbr.rel (%p197) target = $region36
        $region35: #{tpu_custom_call.1} parent=31 // pred_region
          %p200 = scmp.lt.s32.totalorder %s21, 1
          %s201 = scalar_select %p200, %s21, 1
          %p202 = scmp.lt.s32.totalorder %s22, 0
          %s203 = scalar_select %p202, %s22, 0
          %s204 = sadd.s32 %s203, %s201
          %s205 = smul.addr %s204, 4
          %s206 = scalar_lea.vmem %s0, %s205
        $region36: #{tpu_custom_call.1} parent=31 // pred_fallthru
          _
      $region32: #{tpu_custom_call.1} parent=5 // pred_fallthru
        _
      %p207 = scmp.le.s32.totalorder 1, %s14
      %p208 = scmp.lt.s32.totalorder %s14, 3
      %p209 = pnand %p207, %p208
      %p210 = pneg %p209
      // Predicated region
      $region37: #{tpu_custom_call.1} parent=5 // pred_check
        _
      $region38: #{tpu_custom_call.1} parent=5 // pred_check_branch
        %212 = sbr.rel (%p209) target = $region40
      $region39: #{tpu_custom_call.1} parent=5 // pred_region
        %s213 = ssub.s32 %s14, 1
        %p214 = scmp.lt.s32.totalorder %s23, 1
        %s215 = scalar_select %p214, %s23, 1
        %p216 = scmp.lt.s32.totalorder %s24, 0
        %s217 = scalar_select %p216, %s24, 0
        %s218 = sadd.s32 %s217, %s215
        %s219 = smul.addr %s218, 4
        %s220 = scalar_lea.vmem %s0, %s219
        %p221 = pneg %p54
        %p222 = pneg %p51
        %p223 = pneg %p75
        %p224 = pneg %p72
        %p225 = pneg %p96
        %p226 = pneg %p93
        %p227 = pneg %p117
        %p228 = pneg %p114
        %p229 = pneg %p138
        %p230 = pneg %p135
        %p231 = pneg %p166
        %p232 = pneg %p163
        %s233 = sand.u32 %s153, 1
        %s234 = scalar_lea.sflag [#allocation3], %s233
        %s235 = sand.u32 %s153, 1
        %s236 = smul.addr %s235, 8
        %s237 = scalar_lea.vmem [#allocation2], %s236
        %p238 = scmp.lt.s32.totalorder %s23, 1
        %s239 = scalar_select %p238, %s23, 1
        %p240 = scmp.lt.s32.totalorder %s24, 0
        %s241 = scalar_select %p240, %s24, 0
        %s242 = sadd.s32 %s241, %s239
        %s243 = smul.addr %s242, 4
        %s244 = scalar_lea.vmem %s0, %s243
        %v246 = vld [vmem:[%s244] sm:$0xf]
        %v247 = vpack.c.bf16 %v246, %v246
        %v248 = vld [vmem:[%s1] sm:$0xf]
        %v249 = vld [vmem:[%s2] sm:$0xff]
        %251 = vset.pattern.permute.xlu0 0
        %252 = vperm.xlu0 %251, %v249
        %v253 = vpop.permute.xlu0 %252
        %vm255 = vcmask 31744
        %v257 = vsel %vm255, %v248, 0
        %vm259 = vcmask 1041408
        %v261 = vsel %vm259, %v247, 0
        %263 = vmatpush.bf16.msra.mxu0 0
        %264 = vmatpush.bf16.msra.mxu0 0
        %265 = vmatpush.bf16.msra.mxu0 0
        %266 = vmatpush.bf16.msra.mxu0 0
        %267 = vmatpush.bf16.msra.mxu0 0
        %268 = vmatpush.bf16.msra.mxu0 0
        %269 = vmatpush.bf16.msra.mxu0 0
        %270 = vmatpush.bf16.msra.mxu0 %v261
        %271 = vmatmul.bf16.gmra.mxu0 %v257
        %v272 = vpop.f32.mrf.mxu0
        %v273 = vadd.f32 %v253, %v272
        %v274 = vpop.f32.mrf.mxu0
        %275 = vdwg.mxu0
        %v276 = vmax.f32 %v273, 0.0
        %v277 = vld [vmem:[%s3] sm:$0xf]
        %v278 = vpack.c.bf16 %v276, %v276
        %v279 = vld [vmem:[%s4] sm:$0xff]
        %281 = vset.pattern.permute.xlu0 0
        %282 = vperm.xlu0 %281, %v279
        %v283 = vpop.permute.xlu0 %282
        %vm285 = vcmask 64512
        %v287 = vsel %vm285, %v277, 0
        %vm289 = vcmask 1043456
        %v291 = vsel %vm289, %v278, 0
        %293 = vmatpush.bf16.msra.mxu0 0
        %294 = vmatpush.bf16.msra.mxu0 0
        %295 = vmatpush.bf16.msra.mxu0 0
        %296 = vmatpush.bf16.msra.mxu0 0
        %297 = vmatpush.bf16.msra.mxu0 0
        %298 = vmatpush.bf16.msra.mxu0 0
        %299 = vmatpush.bf16.msra.mxu0 0
        %300 = vmatpush.bf16.msra.mxu0 %v291
        %301 = vmatmul.bf16.gmra.mxu0 %v287
        %v302 = vpop.f32.mrf.mxu0
        %v303 = vadd.f32 %v283, %v302
        %v304 = vpop.f32.mrf.mxu0
        %305 = vdwg.mxu0
        %306 = vst [vmem:[%s237] sm:$0xff] %v303
        %s307 = sand.u32 %s153, 1
        %s308 = scalar_lea.sflag [#allocation3], %s307
        %s309 = sand.u32 %s153, 1
        %s310 = smul.addr %s309, 8
        %s311 = scalar_lea.vmem [#allocation2], %s310
        // Predicated region
        $region41: #{tpu_custom_call.1} parent=39 // pred_check
          %p312 = pneg %p163
        $region42: #{tpu_custom_call.1} parent=39 // pred_check_branch
          %314 = sbr.rel (%p312) target = $region44
        $region43: #{tpu_custom_call.1} parent=39 // pred_region
          %316 = vsyncadd %s308, 0
          %s317 = sadd.s32 %s24, %s23
          %s318 = smul.addr %s317, 8
          %s319 = scalar_lea.hbm %s5, %s318
          %s321 = sshll.u32 %s311, 4
          %s322 = int_to_ptr.vmem [resolvable:$true] %s321
          %s323 = sshll.u32 %s319, 4
          %s324 = int_to_ptr.hbm [resolvable:$true] %s323
          %326 = dma.vmem_to_hbm [thread:$0]  %s322, 128, %s324, %s308
        $region44: #{tpu_custom_call.1} parent=39 // pred_fallthru
          _
      $region40: #{tpu_custom_call.1} parent=5 // pred_fallthru
        _
      %p327 = scmp.le.s32.totalorder 2, %s14
      // Predicated region
      $region45: #{tpu_custom_call.1} parent=5 // pred_check
        %p328 = pneg %p327
      $region46: #{tpu_custom_call.1} parent=5 // pred_check_branch
        %330 = sbr.rel (%p328) target = $region48
      $region47: #{tpu_custom_call.1} parent=5 // pred_region
        %s331 = ssub.s32 %s14, 2
        // Predicated region
        $region49: #{tpu_custom_call.1} parent=47 // pred_check
          %p332 = pneg %p169
        $region50: #{tpu_custom_call.1} parent=47 // pred_check_branch
          %334 = sbr.rel (%p332) target = $region52
        $region51: #{tpu_custom_call.1} parent=47 // pred_region
          %s335 = sand.u32 %s154, 1
          %s336 = scalar_lea.sflag [#allocation3], %s335
          %s337 = sand.u32 %s154, 1
          %s338 = smul.addr %s337, 8
          %s339 = scalar_lea.vmem [#allocation2], %s338
          %341 = dma.done %s336, 128
        $region52: #{tpu_custom_call.1} parent=47 // pred_fallthru
          _
      $region48: #{tpu_custom_call.1} parent=5 // pred_fallthru
        _
    $region6: #{tpu_custom_call.1} parent=1 // loop_footer
      %s18 = sadd.s32 1, %s14
    $region7: #{tpu_custom_call.1} parent=1 // loop_footer_branch
      %13 = sbr.rel target = $region3
    $region8: #{tpu_custom_call.1} parent=1 // loop_exit
      _
    %342 = vsyncpa [#allocation3], 1
    %s343 = scalar_lea.sflag [#allocation3], 1
    %344 = vsyncpa %s343, 1

</llo_original>
